<compile_context>
chip_gen: v6e
topology: v6e:2x2x1
jax: 0.10.0
libtpu: 0.0.40
codegen_flags: <defaults>
</compile_context>

<pallas_src>
import functools

import jax
import jax.numpy as jnp
from jax.experimental import pallas as pl
from jax.experimental.pallas import tpu as pltpu


def _round_up(x, m):
    return ((x + m - 1) // m) * m


def _pad_axis(a, axis, target):
    pad = target - a.shape[axis]
    if pad <= 0:
        return a
    widths = [(0, 0)] * a.ndim
    widths[axis] = (0, pad)
    return jnp.pad(a, widths)


# ---------------------------------------------------------------------------
# Fused Pallas kernel: whole 3-layer encoder in one kernel body.
#   out = leaky(leaky(x @ W1 + b1) @ W2 + b2) @ W3 + b3
# ---------------------------------------------------------------------------
def _encoder_kernel(x_ref, w1_ref, b1_ref, w2_ref, b2_ref, w3_ref, b3_ref,
                    o_ref, h1_ref, h2_ref, *, negative_slope):
    a1 = jnp.dot(x_ref[...], w1_ref[...], preferred_element_type=jnp.float32)
    a1 = a1 + b1_ref[...]                                   # (1,H1) broadcast
    a1 = jnp.where(a1 >= 0.0, a1, negative_slope * a1)
    h1_ref[...] = a1.astype(h1_ref.dtype)                   # VMEM-resident

    a2 = jnp.dot(h1_ref[...], w2_ref[...], preferred_element_type=jnp.float32)
    a2 = a2 + b2_ref[...]
    a2 = jnp.where(a2 >= 0.0, a2, negative_slope * a2)
    h2_ref[...] = a2.astype(h2_ref.dtype)

    a3 = jnp.dot(h2_ref[...], w3_ref[...], preferred_element_type=jnp.float32)
    a3 = a3 + b3_ref[...]
    o_ref[...] = a3.astype(o_ref.dtype)                     # lane-dense store


# ---------------------------------------------------------------------------
# One-time parameter repack (off the hot path).
# Each conv of the tiny ImageEncoder is an exact linear map on the flattened
# per-image activation vector; build that dense matrix once by pushing an
# identity basis through the conv (HIGHEST precision so entries are exact f32).
# Column ordering of every dense matrix is (channel, oh, ow), consistent layer
# to layer, so the kernel never has to reshape/transpose anything.
# ---------------------------------------------------------------------------
def prepare_params(params, image_size, lane=128):
    f32 = jnp.float32
    w1, b1 = params["w1"].astype(f32), params["b1"].astype(f32)
    w2, b2 = params["w2"].astype(f32), params["b2"].astype(f32)
    w3, b3 = params["w3"].astype(f32), params["b3"].astype(f32)
    H = W = image_size

    def conv(x, w, stride, pad):
        return jax.lax.conv_general_dilated(
            x, w, (stride, stride), ((pad, pad), (pad, pad)),
            dimension_numbers=("NCHW", "OIHW", "NCHW"),
            precision=jax.lax.Precision.HIGHEST)

    # layer 1:  (1,H,W) -> (C1,OH1,OW1), k4 s2 p1
    k1 = H * W
    eye1 = jnp.eye(k1, dtype=f32).reshape(k1, 1, H, W)
    d1 = conv(eye1, w1, 2, 1)                       # (k1, C1, OH1, OW1)
    C1, OH1, OW1 = d1.shape[1:]
    n1 = C1 * OH1 * OW1
    W1d = d1.reshape(k1, n1)
    b1d = jnp.repeat(b1, OH1 * OW1)                 # (c1, oh, ow) ordering

    # layer 2:  (C1,OH1,OW1) -> (C2,OH2,OW2), k4 s2 p1
    eye2 = jnp.eye(n1, dtype=f32).reshape(n1, C1, OH1, OW1)
    d2 = conv(eye2, w2, 2, 1)                       # (n1, C2, OH2, OW2)
    C2, OH2, OW2 = d2.shape[1:]
    n2 = C2 * OH2 * OW2
    W2d = d2.reshape(n1, n2)
    b2d = jnp.repeat(b2, OH2 * OW2)

    # layer 3:  k=OH2, s1, p0  ==  already a dense matmul
    F = w3.shape[0]
    assert w3.shape[1:] == (C2, OH2, OW2)
    W3d = w3.reshape(F, n2).T                       # (n2, F)
    b3d = b3

    # Lane-pad every GEMM dimension to a multiple of 128: unmasked stores,
    # aligned MXU RHS.  Zero rows/cols keep the math exact.
    k1p, n1p, n2p, n3p = (_round_up(v, lane) for v in (k1, n1, n2, F))
    W1d = _pad_axis(_pad_axis(W1d, 0, k1p), 1, n1p)
    W2d = _pad_axis(_pad_axis(W2d, 0, n1p), 1, n2p)
    W3d = _pad_axis(_pad_axis(W3d, 0, n2p), 1, n3p)
    b1d = _pad_axis(b1d.reshape(1, -1), 1, n1p)
    b2d = _pad_axis(b2d.reshape(1, -1), 1, n2p)
    b3d = _pad_axis(b3d.reshape(1, -1), 1, n3p)
    return dict(W1=W1d, b1=b1d, W2=W2d, b2=b2d, W3=W3d, b3=b3d)


# ---------------------------------------------------------------------------
# Encoder.forward  (== Encoder.encode): single fused pallas_call.
# ---------------------------------------------------------------------------
def encoder_forward(prepped, x, *, feat_latent_size, block_m_max=256,
                    compute_dtype=jnp.float32):
    """x: (B, T, C, H, W) f32  ->  M: (B*T*C, feat_latent_size) f32."""
    B, T, C, H, W = x.shape
    n = B * T * C                                   # input.view(-1, 1, H, W)

    W1, b1 = prepped["W1"], prepped["b1"]
    W2, b2 = prepped["W2"], prepped["b2"]
    W3, b3 = prepped["W3"], prepped["b3"]
    K1, H1 = W1.shape
    H2 = W2.shape[1]
    H3 = W3.shape[1]

    # Flatten images, pad rows once (sliced once at the very end) and pad the
    # feature lanes to match the lane-padded W1.
    x_flat = x.reshape(n, H * W)
    x_flat = _pad_axis(x_flat, 1, K1)
    block_m = min(block_m_max, _round_up(n, 8))
    m_pad = _round_up(n, block_m)
    x_flat = _pad_axis(x_flat, 0, m_pad).astype(compute_dtype)
    W1c, W2c, W3c = (w.astype(compute_dtype) for w in (W1, W2, W3))

    out = pl.pallas_call(
        functools.partial(_encoder_kernel, negative_slope=0.2),
        grid=(m_pad // block_m,),
        in_specs=[
            pl.BlockSpec((block_m, K1), lambda i: (i, 0)),
            pl.BlockSpec((K1, H1), lambda i: (0, 0)),
            pl.BlockSpec((1, H1), lambda i: (0, 0)),
            pl.BlockSpec((H1, H2), lambda i: (0, 0)),
            pl.BlockSpec((1, H2), lambda i: (0, 0)),
            pl.BlockSpec((H2, H3), lambda i: (0, 0)),
            pl.BlockSpec((1, H3), lambda i: (0, 0)),
        ],
        out_specs=pl.BlockSpec((block_m, H3), lambda i: (i, 0)),
        out_shape=jax.ShapeDtypeStruct((m_pad, H3), jnp.float32),
        scratch_shapes=[
            pltpu.VMEM((block_m, H1), compute_dtype),   # conv1 activations
            pltpu.VMEM((block_m, H2), compute_dtype),   # conv2 activations
        ],
        compiler_params=pltpu.CompilerParams(
            dimension_semantics=("parallel",)),
    )(x_flat, W1c, b1, W2c, b2, W3c, b3)
    return out[:n, :feat_latent_size]


# ---------------------------------------------------------------------------
# Pure-JAX reference (direct convs, PyTorch semantics) for validation.
# ---------------------------------------------------------------------------
def encoder_forward_reference(params, x):
    B, T, C, H, W = x.shape
    imgs = x.reshape(B * T * C, 1, H, W)

    def conv(h, w, b, s, p):
        y = jax.lax.conv_general_dilated(
            h, w, (s, s), ((p, p), (p, p)),
            dimension_numbers=("NCHW", "OIHW", "NCHW"),
            precision=jax.lax.Precision.HIGHEST)
        return y + b.reshape(1, -1, 1, 1)

    h = conv(imgs, params["w1"], params["b1"], 2, 1)
    h = jnp.where(h >= 0, h, 0.2 * h)
    h = conv(h, params["w2"], params["b2"], 2, 1)
    h = jnp.where(h >= 0, h, 0.2 * h)
    h = conv(h, params["w3"], params["b3"], 1, 0)
    return h.reshape(h.shape[0], -1)


# ---------------------------------------------------------------------------
# Deterministic parameter init (PyTorch-default style uniform, fan_in scaled)
# ---------------------------------------------------------------------------
def _init_conv(key, out_ch, in_ch, k):
    kw_key, kb_key = jax.random.split(key)
    fan_in = in_ch * k * k
    bound = 1.0 / jnp.sqrt(fan_in)
    w = jax.random.uniform(kw_key, (out_ch, in_ch, k, k), jnp.float32,
                           -bound, bound)
    b = jax.random.uniform(kb_key, (out_ch,), jnp.float32, -bound, bound)
    return w, b


def init_params(key, ngf, feat_latent_size):
    k1, k2, k3 = jax.random.split(key, 3)
    w1, b1 = _init_conv(k1, ngf, 1, 4)
    w2, b2 = _init_conv(k2, 2 * ngf, ngf, 4)
    w3, b3 = _init_conv(k3, feat_latent_size, 2 * ngf, 4)
    return dict(w1=w1, b1=b1, w2=w2, b2=b2, w3=w3, b3=b3)


if __name__ == "__main__":
    # Small shapes consistent with the module.
    batch = 2
    n_frames_input = 3
    n_channels = 1
    image_size = 16
    feat_latent_size = 32
    ngf = 8

    key = jax.random.PRNGKey(0)
    k_param, k_x = jax.random.split(key)
    params = init_params(k_param, ngf, feat_latent_size)
    x = jax.random.normal(
        k_x, (batch, n_frames_input, n_channels, image_size, image_size),
        dtype=jnp.float32)

    # One-time weight repack (off the hot path).
    prepped = prepare_params(params, image_size)

    fwd = jax.jit(functools.partial(encoder_forward,
                                    feat_latent_size=feat_latent_size))
    M = fwd(prepped, x)
    M = jax.block_until_ready(M)

    assert M.shape == (batch * n_frames_input * n_channels,
                       feat_latent_size), M.shape
    assert M.dtype == jnp.float32
    assert bool(jnp.all(jnp.isfinite(M)))

    # Numerical check against direct per-layer convolutions.
    ref = encoder_forward_reference(params, x)
    assert bool(jnp.allclose(M, ref, rtol=2e-2, atol=2e-2)), \
        float(jnp.max(jnp.abs(M - ref)))

    print("KERNEL_OK")
</pallas_src>

<mosaic_0001>
module attributes {stable_mosaic.version = 11 : i64} {
  func.func @_encoder_kernel(%arg0: i32, %arg1: memref<8x256xf32, #tpu.memory_space<vmem>>, %arg2: memref<256x512xf32, #tpu.memory_space<vmem>>, %arg3: memref<1x512xf32, #tpu.memory_space<vmem>>, %arg4: memref<512x256xf32, #tpu.memory_space<vmem>>, %arg5: memref<1x256xf32, #tpu.memory_space<vmem>>, %arg6: memref<256x128xf32, #tpu.memory_space<vmem>>, %arg7: memref<1x128xf32, #tpu.memory_space<vmem>>, %arg8: memref<8x128xf32, #tpu.memory_space<vmem>>, %arg9: memref<8x512xf32, #tpu.memory_space<vmem>>, %arg10: memref<8x256xf32, #tpu.memory_space<vmem>>) attributes {dimension_semantics = [#tpu.dimension_semantics<parallel>], iteration_bounds = array<i64: 1>, scalar_prefetch = 0 : i64, scratch_operands = 2 : i64, tpu.core_type = #tpu.core_type<tc>, window_params = [{transform_indices = @transform_0, window_bounds = array<i64: 8, 256>}, {pipeline_mode = #tpu.pipeline_mode<synchronous>, transform_indices = @transform_1, window_bounds = array<i64: 256, 512>}, {pipeline_mode = #tpu.pipeline_mode<synchronous>, transform_indices = @transform_2, window_bounds = array<i64: 1, 512>}, {pipeline_mode = #tpu.pipeline_mode<synchronous>, transform_indices = @transform_3, window_bounds = array<i64: 512, 256>}, {pipeline_mode = #tpu.pipeline_mode<synchronous>, transform_indices = @transform_4, window_bounds = array<i64: 1, 256>}, {pipeline_mode = #tpu.pipeline_mode<synchronous>, transform_indices = @transform_5, window_bounds = array<i64: 256, 128>}, {pipeline_mode = #tpu.pipeline_mode<synchronous>, transform_indices = @transform_6, window_bounds = array<i64: 1, 128>}, {transform_indices = @transform_7, window_bounds = array<i64: 8, 128>}]} {
    %c0 = arith.constant 0 : index
    %c0_0 = arith.constant 0 : index
    %0 = vector.load %arg1[%c0, %c0_0] : memref<8x256xf32, #tpu.memory_space<vmem>>, vector<8x256xf32>
    %c0_1 = arith.constant 0 : index
    %c0_2 = arith.constant 0 : index
    %1 = vector.load %arg2[%c0_1, %c0_2] : memref<256x512xf32, #tpu.memory_space<vmem>>, vector<256x512xf32>
    %cst = arith.constant dense<0.000000e+00> : vector<8x512xf32>
    %2 = tpu.matmul %0, %1, %cst {dimension_numbers = #tpu.dot_dimension_numbers<[1], [0], [0], [1], [0, 0, 1, 1], [], []>} : vector<8x256xf32>, vector<256x512xf32>, vector<8x512xf32> -> vector<8x512xf32>
    %c0_3 = arith.constant 0 : index
    %c0_4 = arith.constant 0 : index
    %3 = vector.load %arg3[%c0_3, %c0_4] : memref<1x512xf32, #tpu.memory_space<vmem>>, vector<1x512xf32>
    %4 = vector.broadcast %3 : vector<1x512xf32> to vector<8x512xf32>
    %5 = arith.addf %2, %4 : vector<8x512xf32>
    %cst_5 = arith.constant 0.000000e+00 : f32
    %6 = vector.broadcast %cst_5 : f32 to vector<8x512xf32>
    %7 = arith.cmpf oge, %5, %6 : vector<8x512xf32>
    %cst_6 = arith.constant 2.000000e-01 : f32
    %8 = vector.broadcast %cst_6 : f32 to vector<8x512xf32>
    %9 = arith.mulf %8, %5 : vector<8x512xf32>
    %10 = arith.select %7, %5, %9 : vector<8x512xi1>, vector<8x512xf32>
    %c0_7 = arith.constant 0 : index
    %c0_8 = arith.constant 0 : index
    %11 = vector.load %arg9[%c0_7, %c0_8] : memref<8x512xf32, #tpu.memory_space<vmem>>, vector<8x512xf32>
    tpu.vector_store %arg9[%c0_7, %c0_8], %10 {strides = array<i32>} : memref<8x512xf32, #tpu.memory_space<vmem>>, vector<8x512xf32>,
    %c0_9 = arith.constant 0 : index
    %c0_10 = arith.constant 0 : index
    %12 = vector.load %arg9[%c0_9, %c0_10] : memref<8x512xf32, #tpu.memory_space<vmem>>, vector<8x512xf32>
    %c0_11 = arith.constant 0 : index
    %c0_12 = arith.constant 0 : index
    %13 = vector.load %arg4[%c0_11, %c0_12] : memref<512x256xf32, #tpu.memory_space<vmem>>, vector<512x256xf32>
    %cst_13 = arith.constant dense<0.000000e+00> : vector<8x256xf32>
    %14 = tpu.matmul %12, %13, %cst_13 {dimension_numbers = #tpu.dot_dimension_numbers<[1], [0], [0], [1], [0, 0, 1, 1], [], []>} : vector<8x512xf32>, vector<512x256xf32>, vector<8x256xf32> -> vector<8x256xf32>
    %c0_14 = arith.constant 0 : index
    %c0_15 = arith.constant 0 : index
    %15 = vector.load %arg5[%c0_14, %c0_15] : memref<1x256xf32, #tpu.memory_space<vmem>>, vector<1x256xf32>
    %16 = vector.broadcast %15 : vector<1x256xf32> to vector<8x256xf32>
    %17 = arith.addf %14, %16 : vector<8x256xf32>
    %cst_16 = arith.constant 0.000000e+00 : f32
    %18 = vector.broadcast %cst_16 : f32 to vector<8x256xf32>
    %19 = arith.cmpf oge, %17, %18 : vector<8x256xf32>
    %cst_17 = arith.constant 2.000000e-01 : f32
    %20 = vector.broadcast %cst_17 : f32 to vector<8x256xf32>
    %21 = arith.mulf %20, %17 : vector<8x256xf32>
    %22 = arith.select %19, %17, %21 : vector<8x256xi1>, vector<8x256xf32>
    %c0_18 = arith.constant 0 : index
    %c0_19 = arith.constant 0 : index
    %23 = vector.load %arg10[%c0_18, %c0_19] : memref<8x256xf32, #tpu.memory_space<vmem>>, vector<8x256xf32>
    tpu.vector_store %arg10[%c0_18, %c0_19], %22 {strides = array<i32>} : memref<8x256xf32, #tpu.memory_space<vmem>>, vector<8x256xf32>,
    %c0_20 = arith.constant 0 : index
    %c0_21 = arith.constant 0 : index
    %24 = vector.load %arg10[%c0_20, %c0_21] : memref<8x256xf32, #tpu.memory_space<vmem>>, vector<8x256xf32>
    %c0_22 = arith.constant 0 : index
    %c0_23 = arith.constant 0 : index
    %25 = vector.load %arg6[%c0_22, %c0_23] : memref<256x128xf32, #tpu.memory_space<vmem>>, vector<256x128xf32>
    %cst_24 = arith.constant dense<0.000000e+00> : vector<8x128xf32>
    %26 = tpu.matmul %24, %25, %cst_24 {dimension_numbers = #tpu.dot_dimension_numbers<[1], [0], [0], [1], [0, 0, 1, 1], [], []>} : vector<8x256xf32>, vector<256x128xf32>, vector<8x128xf32> -> vector<8x128xf32>
    %c0_25 = arith.constant 0 : index
    %c0_26 = arith.constant 0 : index
    %27 = vector.load %arg7[%c0_25, %c0_26] : memref<1x128xf32, #tpu.memory_space<vmem>>, vector<1x128xf32>
    %28 = vector.broadcast %27 : vector<1x128xf32> to vector<8x128xf32>
    %29 = arith.addf %26, %28 : vector<8x128xf32>
    %c0_27 = arith.constant 0 : index
    %c0_28 = arith.constant 0 : index
    %30 = vector.load %arg8[%c0_27, %c0_28] : memref<8x128xf32, #tpu.memory_space<vmem>>, vector<8x128xf32>
    tpu.vector_store %arg8[%c0_27, %c0_28], %29 {strides = array<i32>} : memref<8x128xf32, #tpu.memory_space<vmem>>, vector<8x128xf32>,
    return
  }
  func.func @transform_0(%arg0: i32) -> (i32, i32) {
    %c0_i32 = arith.constant 0 : i32
    %c0_i32_0 = arith.constant 0 : i32
    return %arg0, %c0_i32 : i32, i32
  }
  func.func @transform_1(%arg0: i32) -> (i32, i32) {
    %c0_i32 = arith.constant 0 : i32
    %c0_i32_0 = arith.constant 0 : i32
    %c0_i32_1 = arith.constant 0 : i32
    return %c0_i32, %c0_i32_0 : i32, i32
  }
  func.func @transform_2(%arg0: i32) -> (i32, i32) {
    %c0_i32 = arith.constant 0 : i32
    %c0_i32_0 = arith.constant 0 : i32
    %c0_i32_1 = arith.constant 0 : i32
    return %c0_i32, %c0_i32_0 : i32, i32
  }
  func.func @transform_3(%arg0: i32) -> (i32, i32) {
    %c0_i32 = arith.constant 0 : i32
    %c0_i32_0 = arith.constant 0 : i32
    %c0_i32_1 = arith.constant 0 : i32
    return %c0_i32, %c0_i32_0 : i32, i32
  }
  func.func @transform_4(%arg0: i32) -> (i32, i32) {
    %c0_i32 = arith.constant 0 : i32
    %c0_i32_0 = arith.constant 0 : i32
    %c0_i32_1 = arith.constant 0 : i32
    return %c0_i32, %c0_i32_0 : i32, i32
  }
  func.func @transform_5(%arg0: i32) -> (i32, i32) {
    %c0_i32 = arith.constant 0 : i32
    %c0_i32_0 = arith.constant 0 : i32
    %c0_i32_1 = arith.constant 0 : i32
    return %c0_i32, %c0_i32_0 : i32, i32
  }
  func.func @transform_6(%arg0: i32) -> (i32, i32) {
    %c0_i32 = arith.constant 0 : i32
    %c0_i32_0 = arith.constant 0 : i32
    %c0_i32_1 = arith.constant 0 : i32
    return %c0_i32, %c0_i32_0 : i32, i32
  }
  func.func @transform_7(%arg0: i32) -> (i32, i32) {
    %c0_i32 = arith.constant 0 : i32
    %c0_i32_0 = arith.constant 0 : i32
    return %arg0, %c0_i32 : i32, i32
  }
}

</mosaic_0001>

<llo_original>
// kernel: encoder_forward.1
$region0: #{encoder_forward.1}
  #allocation0 [shape = 'u32[]', space=smem, size = 0x4, offset = 0x4, fixed_abs, tag = 'smem constant byte address 0x4 - core index']
  #allocation1 [shape = 'u32[144,128]{1,0:T(1,128)}', space=vmem, size = 0x12000, scoped, tag = 'internal scratch']
  #allocation2 [shape = 'f32[8,512]{1,0:T(8,128)}', space=vmem, size = 0x4000, scoped, tag = 'scratch operand']
  #allocation3 [shape = 'f32[8,256]{1,0:T(8,128)}', space=vmem, size = 0x2000, scoped, tag = 'scratch operand']
  %s0 = inlined_call_operand.vmem [shape: f32[8,256], index: 0, kind: input, shape index: {}]
  %s1 = inlined_call_operand.hbm [shape: f32[256,512], index: 1, kind: input, shape index: {}]
  %s2 = inlined_call_operand.vmem [shape: f32[1,512], index: 2, kind: input, shape index: {}]
  %s3 = inlined_call_operand.hbm [shape: f32[512,256], index: 3, kind: input, shape index: {}]
  %s4 = inlined_call_operand.vmem [shape: f32[1,256], index: 4, kind: input, shape index: {}]
  %s5 = inlined_call_operand.hbm [shape: f32[256,128], index: 5, kind: input, shape index: {}]
  %s6 = inlined_call_operand.vmem [shape: f32[1,128], index: 6, kind: input, shape index: {}]
  %s7 = inlined_call_operand.hbm [shape: f32[8,128], index: 7, kind: output, shape index: {}]
  %s8 = sld [smem:[#allocation0]]
  $region50: #{encoder_forward.1} parent=0
    _
  %s10 = ssub.s32 1, %s8
  %s11 = scalar_select 0, %s10, %s8
  $region1: #{encoder_forward.1} parent=0
    #allocation4 [shape = 'u8[524288]{0}', space=vmem, size = 0x80000, scoped, tag = 'input window, operand 1, single buffered']
    #allocation5 [shape = 's32[1]{0}', space=sflag, size = 0x4, scoped, tag = 'scoped memory for encoder_forward.1']
    #allocation6 [shape = 's32[1]{0}', space=sflag, size = 0x4, scoped, tag = 'scoped memory for encoder_forward.1']
    #allocation7 [shape = 'u8[524288]{0}', space=vmem, size = 0x80000, scoped, tag = 'input window, operand 3, single buffered']
    #allocation8 [shape = 's32[1]{0}', space=sflag, size = 0x4, scoped, tag = 'scoped memory for encoder_forward.1']
    #allocation9 [shape = 'u8[131072]{0}', space=vmem, size = 0x20000, scoped, tag = 'input window, operand 5, single buffered']
    #allocation10 [shape = 'u8[4096]{0}', space=vmem, size = 0x1000, scoped, tag = 'output window, operand 0, single buffered']
    %12 = vsyncpa [#allocation5], 0
    %13 = vsyncpa [#allocation8], 0
    %14 = vsyncpa [#allocation6], 0
    // Predicated region
    $region2: #{encoder_forward.1} parent=1 // pred_check
      _
    $region3: #{encoder_forward.1} parent=1 // pred_check_branch
      %16 = sbr.rel (0) target = $region5
    $region4: #{encoder_forward.1} parent=1 // pred_region
      _
    $region5: #{encoder_forward.1} parent=1 // pred_fallthru
      _
    // Predicated region
    $region6: #{encoder_forward.1} parent=1 // pred_check
      _
    $region7: #{encoder_forward.1} parent=1 // pred_check_branch
      %18 = sbr.rel (0) target = $region9
    $region8: #{encoder_forward.1} parent=1 // pred_region
      %s20 = ssub.s32 16384, 16384
      %21 = vsyncadd [#allocation5], %s20
      %s22 = sshll.u32 [#allocation4], 4
      %s23 = int_to_ptr.vmem [resolvable:$true] %s22
      %28 = dma.hbm_to_vmem [thread:$0]  %s1, 16384, %s23, [#allocation5], 512, 512, 32
    $region9: #{encoder_forward.1} parent=1 // pred_fallthru
      _
    // Predicated region
    $region10: #{encoder_forward.1} parent=1 // pred_check
      _
    $region11: #{encoder_forward.1} parent=1 // pred_check_branch
      %30 = sbr.rel (0) target = $region13
    $region12: #{encoder_forward.1} parent=1 // pred_region
      _
    $region13: #{encoder_forward.1} parent=1 // pred_fallthru
      _
    // Predicated region
    $region14: #{encoder_forward.1} parent=1 // pred_check
      _
    $region15: #{encoder_forward.1} parent=1 // pred_check_branch
      %32 = sbr.rel (0) target = $region17
    $region16: #{encoder_forward.1} parent=1 // pred_region
      %s34 = ssub.s32 16384, 16384
      %35 = vsyncadd [#allocation8], %s34
      %s36 = sshll.u32 [#allocation7], 4
      %s37 = int_to_ptr.vmem [resolvable:$true] %s36
      %42 = dma.hbm_to_vmem [thread:$0]  %s3, 16384, %s37, [#allocation8], 256, 256, 16
    $region17: #{encoder_forward.1} parent=1 // pred_fallthru
      _
    // Predicated region
    $region18: #{encoder_forward.1} parent=1 // pred_check
      _
    $region19: #{encoder_forward.1} parent=1 // pred_check_branch
      %44 = sbr.rel (0) target = $region21
    $region20: #{encoder_forward.1} parent=1 // pred_region
      _
    $region21: #{encoder_forward.1} parent=1 // pred_fallthru
      _
    // Predicated region
    $region22: #{encoder_forward.1} parent=1 // pred_check
      _
    $region23: #{encoder_forward.1} parent=1 // pred_check_branch
      %46 = sbr.rel (0) target = $region25
    $region24: #{encoder_forward.1} parent=1 // pred_region
      %s48 = ssub.s32 4096, 4096
      %49 = vsyncadd [#allocation8], %s48
      %s50 = sshll.u32 [#allocation9], 4
      %s51 = int_to_ptr.vmem [resolvable:$true] %s50
      %56 = dma.hbm_to_vmem [thread:$0]  %s5, 4096, %s51, [#allocation8], 128, 128, 8
    $region25: #{encoder_forward.1} parent=1 // pred_fallthru
      _
    // Predicated region
    $region26: #{encoder_forward.1} parent=1 // pred_check
      _
    $region27: #{encoder_forward.1} parent=1 // pred_check_branch
      %58 = sbr.rel (0) target = $region29
    $region28: #{encoder_forward.1} parent=1 // pred_region
      _
    $region29: #{encoder_forward.1} parent=1 // pred_fallthru
      _
    // Predicated region
    $region30: #{encoder_forward.1} parent=1 // pred_check
      _
    $region31: #{encoder_forward.1} parent=1 // pred_check_branch
      %60 = sbr.rel (0) target = $region33
    $region32: #{encoder_forward.1} parent=1 // pred_region
      %61 = dma.done [#allocation5], 16384
    $region33: #{encoder_forward.1} parent=1 // pred_fallthru
      _
    // Predicated region
    $region34: #{encoder_forward.1} parent=1 // pred_check
      _
    $region35: #{encoder_forward.1} parent=1 // pred_check_branch
      %63 = sbr.rel (0) target = $region37
    $region36: #{encoder_forward.1} parent=1 // pred_region
      %64 = dma.done [#allocation8], 16384
    $region37: #{encoder_forward.1} parent=1 // pred_fallthru
      _
    // Predicated region
    $region38: #{encoder_forward.1} parent=1 // pred_check
      _
    $region39: #{encoder_forward.1} parent=1 // pred_check_branch
      %66 = sbr.rel (0) target = $region41
    $region40: #{encoder_forward.1} parent=1 // pred_region
      %67 = dma.done [#allocation8], 4096
    $region41: #{encoder_forward.1} parent=1 // pred_fallthru
      _
    %v68 = vld [vmem:[%s0] sm:$0xff]
    %v69 = vld [vmem:[%s0 + $0x8] sm:$0xff]
    %v70 = vld [vmem:[#allocation4] sm:$0xff]
    %v71 = vld [vmem:[#allocation4 + $0x8] sm:$0xff]
    %v72 = vld [vmem:[#allocation4 + $0x10] sm:$0xff]
    %v73 = vld [vmem:[#allocation4 + $0x18] sm:$0xff]
    %v74 = vld [vmem:[#allocation4 + $0x20] sm:$0xff]
    %v75 = vld [vmem:[#allocation4 + $0x28] sm:$0xff]
    %v76 = vld [vmem:[#allocation4 + $0x30] sm:$0xff]
    %v77 = vld [vmem:[#allocation4 + $0x38] sm:$0xff]
    %v78 = vld [vmem:[#allocation4 + $0x40] sm:$0xff]
    %v79 = vld [vmem:[#allocation4 + $0x48] sm:$0xff]
    %v80 = vld [vmem:[#allocation4 + $0x50] sm:$0xff]
    %v81 = vld [vmem:[#allocation4 + $0x58] sm:$0xff]
    %v82 = vld [vmem:[#allocation4 + $0x60] sm:$0xff]
    %v83 = vld [vmem:[#allocation4 + $0x68] sm:$0xff]
    %v84 = vld [vmem:[#allocation4 + $0x70] sm:$0xff]
    %v85 = vld [vmem:[#allocation4 + $0x78] sm:$0xff]
    %v86 = vld [vmem:[#allocation4 + $0x80] sm:$0xff]
    %v87 = vld [vmem:[#allocation4 + $0x88] sm:$0xff]
    %v88 = vld [vmem:[#allocation4 + $0x90] sm:$0xff]
    %v89 = vld [vmem:[#allocation4 + $0x98] sm:$0xff]
    %v90 = vld [vmem:[#allocation4 + $0xa0] sm:$0xff]
    %v91 = vld [vmem:[#allocation4 + $0xa8] sm:$0xff]
    %v92 = vld [vmem:[#allocation4 + $0xb0] sm:$0xff]
    %v93 = vld [vmem:[#allocation4 + $0xb8] sm:$0xff]
    %v94 = vld [vmem:[#allocation4 + $0xc0] sm:$0xff]
    %v95 = vld [vmem:[#allocation4 + $0xc8] sm:$0xff]
    %v96 = vld [vmem:[#allocation4 + $0xd0] sm:$0xff]
    %v97 = vld [vmem:[#allocation4 + $0xd8] sm:$0xff]
    %v98 = vld [vmem:[#allocation4 + $0xe0] sm:$0xff]
    %v99 = vld [vmem:[#allocation4 + $0xe8] sm:$0xff]
    %v100 = vld [vmem:[#allocation4 + $0xf0] sm:$0xff]
    %v101 = vld [vmem:[#allocation4 + $0xf8] sm:$0xff]
    %v102 = vld [vmem:[#allocation4 + $0x100] sm:$0xff]
    %v103 = vld [vmem:[#allocation4 + $0x108] sm:$0xff]
    %v104 = vld [vmem:[#allocation4 + $0x110] sm:$0xff]
    %v105 = vld [vmem:[#allocation4 + $0x118] sm:$0xff]
    %v106 = vld [vmem:[#allocation4 + $0x120] sm:$0xff]
    %v107 = vld [vmem:[#allocation4 + $0x128] sm:$0xff]
    %v108 = vld [vmem:[#allocation4 + $0x130] sm:$0xff]
    %v109 = vld [vmem:[#allocation4 + $0x138] sm:$0xff]
    %v110 = vld [vmem:[#allocation4 + $0x140] sm:$0xff]
    %v111 = vld [vmem:[#allocation4 + $0x148] sm:$0xff]
    %v112 = vld [vmem:[#allocation4 + $0x150] sm:$0xff]
    %v113 = vld [vmem:[#allocation4 + $0x158] sm:$0xff]
    %v114 = vld [vmem:[#allocation4 + $0x160] sm:$0xff]
    %v115 = vld [vmem:[#allocation4 + $0x168] sm:$0xff]
    %v116 = vld [vmem:[#allocation4 + $0x170] sm:$0xff]
    %v117 = vld [vmem:[#allocation4 + $0x178] sm:$0xff]
    %v118 = vld [vmem:[#allocation4 + $0x180] sm:$0xff]
    %v119 = vld [vmem:[#allocation4 + $0x188] sm:$0xff]
    %v120 = vld [vmem:[#allocation4 + $0x190] sm:$0xff]
    %v121 = vld [vmem:[#allocation4 + $0x198] sm:$0xff]
    %v122 = vld [vmem:[#allocation4 + $0x1a0] sm:$0xff]
    %v123 = vld [vmem:[#allocation4 + $0x1a8] sm:$0xff]
    %v124 = vld [vmem:[#allocation4 + $0x1b0] sm:$0xff]
    %v125 = vld [vmem:[#allocation4 + $0x1b8] sm:$0xff]
    %v126 = vld [vmem:[#allocation4 + $0x1c0] sm:$0xff]
    %v127 = vld [vmem:[#allocation4 + $0x1c8] sm:$0xff]
    %v128 = vld [vmem:[#allocation4 + $0x1d0] sm:$0xff]
    %v129 = vld [vmem:[#allocation4 + $0x1d8] sm:$0xff]
    %v130 = vld [vmem:[#allocation4 + $0x1e0] sm:$0xff]
    %v131 = vld [vmem:[#allocation4 + $0x1e8] sm:$0xff]
    %v132 = vld [vmem:[#allocation4 + $0x1f0] sm:$0xff]
    %v133 = vld [vmem:[#allocation4 + $0x1f8] sm:$0xff]
    %v134 = vld [vmem:[#allocation4 + $0x200] sm:$0xff]
    %v135 = vld [vmem:[#allocation4 + $0x208] sm:$0xff]
    %v136 = vld [vmem:[#allocation4 + $0x210] sm:$0xff]
    %v137 = vld [vmem:[#allocation4 + $0x218] sm:$0xff]
    %v138 = vld [vmem:[#allocation4 + $0x220] sm:$0xff]
    %v139 = vld [vmem:[#allocation4 + $0x228] sm:$0xff]
    %v140 = vld [vmem:[#allocation4 + $0x230] sm:$0xff]
    %v141 = vld [vmem:[#allocation4 + $0x238] sm:$0xff]
    %v142 = vld [vmem:[#allocation4 + $0x240] sm:$0xff]
    %v143 = vld [vmem:[#allocation4 + $0x248] sm:$0xff]
    %v144 = vld [vmem:[#allocation4 + $0x250] sm:$0xff]
    %v145 = vld [vmem:[#allocation4 + $0x258] sm:$0xff]
    %v146 = vld [vmem:[#allocation4 + $0x260] sm:$0xff]
    %v147 = vld [vmem:[#allocation4 + $0x268] sm:$0xff]
    %v148 = vld [vmem:[#allocation4 + $0x270] sm:$0xff]
    %v149 = vld [vmem:[#allocation4 + $0x278] sm:$0xff]
    %v150 = vld [vmem:[#allocation4 + $0x280] sm:$0xff]
    %v151 = vld [vmem:[#allocation4 + $0x288] sm:$0xff]
    %v152 = vld [vmem:[#allocation4 + $0x290] sm:$0xff]
    %v153 = vld [vmem:[#allocation4 + $0x298] sm:$0xff]
    %v154 = vld [vmem:[#allocation4 + $0x2a0] sm:$0xff]
    %v155 = vld [vmem:[#allocation4 + $0x2a8] sm:$0xff]
    %v156 = vld [vmem:[#allocation4 + $0x2b0] sm:$0xff]
    %v157 = vld [vmem:[#allocation4 + $0x2b8] sm:$0xff]
    %v158 = vld [vmem:[#allocation4 + $0x2c0] sm:$0xff]
    %v159 = vld [vmem:[#allocation4 + $0x2c8] sm:$0xff]
    %v160 = vld [vmem:[#allocation4 + $0x2d0] sm:$0xff]
    %v161 = vld [vmem:[#allocation4 + $0x2d8] sm:$0xff]
    %v162 = vld [vmem:[#allocation4 + $0x2e0] sm:$0xff]
    %v163 = vld [vmem:[#allocation4 + $0x2e8] sm:$0xff]
    %v164 = vld [vmem:[#allocation4 + $0x2f0] sm:$0xff]
    %v165 = vld [vmem:[#allocation4 + $0x2f8] sm:$0xff]
    %v166 = vld [vmem:[#allocation4 + $0x300] sm:$0xff]
    %v167 = vld [vmem:[#allocation4 + $0x308] sm:$0xff]
    %v168 = vld [vmem:[#allocation4 + $0x310] sm:$0xff]
    %v169 = vld [vmem:[#allocation4 + $0x318] sm:$0xff]
    %v170 = vld [vmem:[#allocation4 + $0x320] sm:$0xff]
    %v171 = vld [vmem:[#allocation4 + $0x328] sm:$0xff]
    %v172 = vld [vmem:[#allocation4 + $0x330] sm:$0xff]
    %v173 = vld [vmem:[#allocation4 + $0x338] sm:$0xff]
    %v174 = vld [vmem:[#allocation4 + $0x340] sm:$0xff]
    %v175 = vld [vmem:[#allocation4 + $0x348] sm:$0xff]
    %v176 = vld [vmem:[#allocation4 + $0x350] sm:$0xff]
    %v177 = vld [vmem:[#allocation4 + $0x358] sm:$0xff]
    %v178 = vld [vmem:[#allocation4 + $0x360] sm:$0xff]
    %v179 = vld [vmem:[#allocation4 + $0x368] sm:$0xff]
    %v180 = vld [vmem:[#allocation4 + $0x370] sm:$0xff]
    %v181 = vld [vmem:[#allocation4 + $0x378] sm:$0xff]
    %v182 = vld [vmem:[#allocation4 + $0x380] sm:$0xff]
    %v183 = vld [vmem:[#allocation4 + $0x388] sm:$0xff]
    %v184 = vld [vmem:[#allocation4 + $0x390] sm:$0xff]
    %v185 = vld [vmem:[#allocation4 + $0x398] sm:$0xff]
    %v186 = vld [vmem:[#allocation4 + $0x3a0] sm:$0xff]
    %v187 = vld [vmem:[#allocation4 + $0x3a8] sm:$0xff]
    %v188 = vld [vmem:[#allocation4 + $0x3b0] sm:$0xff]
    %v189 = vld [vmem:[#allocation4 + $0x3b8] sm:$0xff]
    %v190 = vld [vmem:[#allocation4 + $0x3c0] sm:$0xff]
    %v191 = vld [vmem:[#allocation4 + $0x3c8] sm:$0xff]
    %v192 = vld [vmem:[#allocation4 + $0x3d0] sm:$0xff]
    %v193 = vld [vmem:[#allocation4 + $0x3d8] sm:$0xff]
    %v194 = vld [vmem:[#allocation4 + $0x3e0] sm:$0xff]
    %v195 = vld [vmem:[#allocation4 + $0x3e8] sm:$0xff]
    %v196 = vld [vmem:[#allocation4 + $0x3f0] sm:$0xff]
    %v197 = vld [vmem:[#allocation4 + $0x3f8] sm:$0xff]
    %v198 = vld [vmem:[%s2] sm:$0xf]
    %v200 = vlaneseq
    %v201 = vshrl.u32 %v200, 7
    %v202 = vsub.s32 0, %v201
    %v203 = vrot.slane %v198, %v202
    %v204 = vlaneseq
    %v205 = vshrl.u32 %v204, 7
    %v206 = vsub.s32 1, %v205
    %v207 = vrot.slane %v198, %v206
    %v208 = vlaneseq
    %v209 = vshrl.u32 %v208, 7
    %v210 = vsub.s32 2, %v209
    %v211 = vrot.slane %v198, %v210
    %v212 = vlaneseq
    %v213 = vshrl.u32 %v212, 7
    %v214 = vsub.s32 3, %v213
    %v215 = vrot.slane %v198, %v214
    %220 = vmatprep.subr.mxu0 %v131
    %221 = vmatpush1.msra.mxu0 %v130
    %222 = vmatprep.subr.mxu0 %v127
    %223 = vmatpush1.msra.mxu0 %v126
    %224 = vmatprep.subr.mxu0 %v123
    %225 = vmatpush1.msra.mxu0 %v122
    %226 = vmatprep.subr.mxu0 %v119
    %227 = vmatpush1.msra.mxu0 %v118
    %228 = vmatprep.subr.mxu0 %v115
    %229 = vmatpush1.msra.mxu0 %v114
    %230 = vmatprep.subr.mxu0 %v111
    %231 = vmatpush1.msra.mxu0 %v110
    %232 = vmatprep.subr.mxu0 %v107
    %233 = vmatpush1.msra.mxu0 %v106
    %234 = vmatprep.subr.mxu0 %v103
    %235 = vmatpush1.msra.mxu0 %v102
    %236 = vmatprep.subr.mxu0 %v99
    %237 = vmatpush1.msra.mxu0 %v98
    %238 = vmatprep.subr.mxu0 %v95
    %239 = vmatpush1.msra.mxu0 %v94
    %240 = vmatprep.subr.mxu0 %v91
    %241 = vmatpush1.msra.mxu0 %v90
    %242 = vmatprep.subr.mxu0 %v87
    %243 = vmatpush1.msra.mxu0 %v86
    %244 = vmatprep.subr.mxu0 %v83
    %245 = vmatpush1.msra.mxu0 %v82
    %246 = vmatprep.subr.mxu0 %v79
    %247 = vmatpush1.msra.mxu0 %v78
    %248 = vmatprep.subr.mxu0 %v75
    %249 = vmatpush1.msra.mxu0 %v74
    %250 = vmatprep.subr.mxu0 %v71
    %251 = vmatpush1.msra.mxu0 %v70
    %252 = vmatprep.subr.mxu0 %v195
    %253 = vmatpush2.msra.mxu0 %v194
    %254 = vmatprep.subr.mxu0 %v191
    %255 = vmatpush2.msra.mxu0 %v190
    %256 = vmatprep.subr.mxu0 %v187
    %257 = vmatpush2.msra.mxu0 %v186
    %258 = vmatprep.subr.mxu0 %v183
    %259 = vmatpush2.msra.mxu0 %v182
    %260 = vmatprep.subr.mxu0 %v179
    %261 = vmatpush2.msra.mxu0 %v178
    %262 = vmatprep.subr.mxu0 %v175
    %263 = vmatpush2.msra.mxu0 %v174
    %264 = vmatprep.subr.mxu0 %v171
    %265 = vmatpush2.msra.mxu0 %v170
    %266 = vmatprep.subr.mxu0 %v167
    %267 = vmatpush2.msra.mxu0 %v166
    %268 = vmatprep.subr.mxu0 %v163
    %269 = vmatpush2.msra.mxu0 %v162
    %270 = vmatprep.subr.mxu0 %v159
    %271 = vmatpush2.msra.mxu0 %v158
    %272 = vmatprep.subr.mxu0 %v155
    %273 = vmatpush2.msra.mxu0 %v154
    %274 = vmatprep.subr.mxu0 %v151
    %275 = vmatpush2.msra.mxu0 %v150
    %276 = vmatprep.subr.mxu0 %v147
    %277 = vmatpush2.msra.mxu0 %v146
    %278 = vmatprep.subr.mxu0 %v143
    %279 = vmatpush2.msra.mxu0 %v142
    %280 = vmatprep.subr.mxu0 %v139
    %281 = vmatpush2.msra.mxu0 %v138
    %282 = vmatprep.subr.mxu0 %v135
    %283 = vmatpush2.msra.mxu0 %v134
    %284 = vmatprep.mubr.f32.mxu0 %v69
    %285 = vmatmul.mubr.f32.gmra.mxu0 %v68
    %v286 = vpop.f32.mrf.mxu0
    %v287 = vadd.f32 %v203, %v286
    %v288 = vpop.f32.mrf.mxu0
    %v289 = vadd.f32 %v207, %v288
    %290 = vdwg.mxu0
    %291 = vmatprep.subr.mxu0 %v133
    %292 = vmatpush1.msra.mxu0 %v132
    %293 = vmatprep.subr.mxu0 %v129
    %294 = vmatpush1.msra.mxu0 %v128
    %295 = vmatprep.subr.mxu0 %v125
    %296 = vmatpush1.msra.mxu0 %v124
    %297 = vmatprep.subr.mxu0 %v121
    %298 = vmatpush1.msra.mxu0 %v120
    %299 = vmatprep.subr.mxu0 %v117
    %300 = vmatpush1.msra.mxu0 %v116
    %301 = vmatprep.subr.mxu0 %v113
    %302 = vmatpush1.msra.mxu0 %v112
    %303 = vmatprep.subr.mxu0 %v109
    %304 = vmatpush1.msra.mxu0 %v108
    %305 = vmatprep.subr.mxu0 %v105
    %306 = vmatpush1.msra.mxu0 %v104
    %307 = vmatprep.subr.mxu0 %v101
    %308 = vmatpush1.msra.mxu0 %v100
    %309 = vmatprep.subr.mxu0 %v97
    %310 = vmatpush1.msra.mxu0 %v96
    %311 = vmatprep.subr.mxu0 %v93
    %312 = vmatpush1.msra.mxu0 %v92
    %313 = vmatprep.subr.mxu0 %v89
    %314 = vmatpush1.msra.mxu0 %v88
    %315 = vmatprep.subr.mxu0 %v85
    %316 = vmatpush1.msra.mxu0 %v84
    %317 = vmatprep.subr.mxu0 %v81
    %318 = vmatpush1.msra.mxu0 %v80
    %319 = vmatprep.subr.mxu0 %v77
    %320 = vmatpush1.msra.mxu0 %v76
    %321 = vmatprep.subr.mxu0 %v73
    %322 = vmatpush1.msra.mxu0 %v72
    %323 = vmatprep.subr.mxu0 %v197
    %324 = vmatpush2.msra.mxu0 %v196
    %325 = vmatprep.subr.mxu0 %v193
    %326 = vmatpush2.msra.mxu0 %v192
    %327 = vmatprep.subr.mxu0 %v189
    %328 = vmatpush2.msra.mxu0 %v188
    %329 = vmatprep.subr.mxu0 %v185
    %330 = vmatpush2.msra.mxu0 %v184
    %331 = vmatprep.subr.mxu0 %v181
    %332 = vmatpush2.msra.mxu0 %v180
    %333 = vmatprep.subr.mxu0 %v177
    %334 = vmatpush2.msra.mxu0 %v176
    %335 = vmatprep.subr.mxu0 %v173
    %336 = vmatpush2.msra.mxu0 %v172
    %337 = vmatprep.subr.mxu0 %v169
    %338 = vmatpush2.msra.mxu0 %v168
    %339 = vmatprep.subr.mxu0 %v165
    %340 = vmatpush2.msra.mxu0 %v164
    %341 = vmatprep.subr.mxu0 %v161
    %342 = vmatpush2.msra.mxu0 %v160
    %343 = vmatprep.subr.mxu0 %v157
    %344 = vmatpush2.msra.mxu0 %v156
    %345 = vmatprep.subr.mxu0 %v153
    %346 = vmatpush2.msra.mxu0 %v152
    %347 = vmatprep.subr.mxu0 %v149
    %348 = vmatpush2.msra.mxu0 %v148
    %349 = vmatprep.subr.mxu0 %v145
    %350 = vmatpush2.msra.mxu0 %v144
    %351 = vmatprep.subr.mxu0 %v141
    %352 = vmatpush2.msra.mxu0 %v140
    %353 = vmatprep.subr.mxu0 %v137
    %354 = vmatpush2.msra.mxu0 %v136
    %355 = vmatprep.mubr.f32.mxu0 %v69
    %356 = vmatmul.mubr.f32.gmra.mxu0 %v68
    %v357 = vpop.f32.mrf.mxu0
    %v358 = vadd.f32 %v211, %v357
    %v359 = vpop.f32.mrf.mxu0
    %v360 = vadd.f32 %v215, %v359
    %361 = vdwg.mxu0
    %vm362 = vcmp.ge.f32.partialorder %v287, 0.0
    %vm363 = vcmp.ge.f32.partialorder %v289, 0.0
    %vm364 = vcmp.ge.f32.partialorder %v358, 0.0
    %vm365 = vcmp.ge.f32.partialorder %v360, 0.0
    %v366 = vmul.f32 %v287, 0.2
    %v367 = vmul.f32 %v289, 0.2
    %v368 = vmul.f32 %v358, 0.2
    %v369 = vmul.f32 %v360, 0.2
    %v370 = vsel %vm362, %v287, %v366
    %v371 = vsel %vm363, %v289, %v367
    %v372 = vsel %vm364, %v358, %v368
    %v373 = vsel %vm365, %v360, %v369
    %374 = vst [vmem:[#allocation2] sm:$0xff] %v370
    %375 = vst [vmem:[#allocation2 + $0x8] sm:$0xff] %v371
    %376 = vst [vmem:[#allocation2 + $0x10] sm:$0xff] %v372
    %377 = vst [vmem:[#allocation2 + $0x18] sm:$0xff] %v373
    %v378 = vld [vmem:[#allocation2] sm:$0xff]
    %v379 = vld [vmem:[#allocation2 + $0x8] sm:$0xff]
    %v380 = vld [vmem:[#allocation2 + $0x10] sm:$0xff]
    %v381 = vld [vmem:[#allocation2 + $0x18] sm:$0xff]
    %v382 = vld [vmem:[#allocation7] sm:$0xff]
    %v383 = vld [vmem:[#allocation7 + $0x8] sm:$0xff]
    %v384 = vld [vmem:[#allocation7 + $0x10] sm:$0xff]
    %v385 = vld [vmem:[#allocation7 + $0x18] sm:$0xff]
    %v386 = vld [vmem:[#allocation7 + $0x20] sm:$0xff]
    %v387 = vld [vmem:[#allocation7 + $0x28] sm:$0xff]
    %v388 = vld [vmem:[#allocation7 + $0x30] sm:$0xff]
    %v389 = vld [vmem:[#allocation7 + $0x38] sm:$0xff]
    %v390 = vld [vmem:[#allocation7 + $0x40] sm:$0xff]
    %v391 = vld [vmem:[#allocation7 + $0x48] sm:$0xff]
    %v392 = vld [vmem:[#allocation7 + $0x50] sm:$0xff]
    %v393 = vld [vmem:[#allocation7 + $0x58] sm:$0xff]
    %v394 = vld [vmem:[#allocation7 + $0x60] sm:$0xff]
    %v395 = vld [vmem:[#allocation7 + $0x68] sm:$0xff]
    %v396 = vld [vmem:[#allocation7 + $0x70] sm:$0xff]
    %v397 = vld [vmem:[#allocation7 + $0x78] sm:$0xff]
    %v398 = vld [vmem:[#allocation7 + $0x80] sm:$0xff]
    %v399 = vld [vmem:[#allocation7 + $0x88] sm:$0xff]
    %v400 = vld [vmem:[#allocation7 + $0x90] sm:$0xff]
    %v401 = vld [vmem:[#allocation7 + $0x98] sm:$0xff]
    %v402 = vld [vmem:[#allocation7 + $0xa0] sm:$0xff]
    %v403 = vld [vmem:[#allocation7 + $0xa8] sm:$0xff]
    %v404 = vld [vmem:[#allocation7 + $0xb0] sm:$0xff]
    %v405 = vld [vmem:[#allocation7 + $0xb8] sm:$0xff]
    %v406 = vld [vmem:[#allocation7 + $0xc0] sm:$0xff]
    %v407 = vld [vmem:[#allocation7 + $0xc8] sm:$0xff]
    %v408 = vld [vmem:[#allocation7 + $0xd0] sm:$0xff]
    %v409 = vld [vmem:[#allocation7 + $0xd8] sm:$0xff]
    %v410 = vld [vmem:[#allocation7 + $0xe0] sm:$0xff]
    %v411 = vld [vmem:[#allocation7 + $0xe8] sm:$0xff]
    %v412 = vld [vmem:[#allocation7 + $0xf0] sm:$0xff]
    %v413 = vld [vmem:[#allocation7 + $0xf8] sm:$0xff]
    %v414 = vld [vmem:[#allocation7 + $0x100] sm:$0xff]
    %v415 = vld [vmem:[#allocation7 + $0x108] sm:$0xff]
    %v416 = vld [vmem:[#allocation7 + $0x110] sm:$0xff]
    %v417 = vld [vmem:[#allocation7 + $0x118] sm:$0xff]
    %v418 = vld [vmem:[#allocation7 + $0x120] sm:$0xff]
    %v419 = vld [vmem:[#allocation7 + $0x128] sm:$0xff]
    %v420 = vld [vmem:[#allocation7 + $0x130] sm:$0xff]
    %v421 = vld [vmem:[#allocation7 + $0x138] sm:$0xff]
    %v422 = vld [vmem:[#allocation7 + $0x140] sm:$0xff]
    %v423 = vld [vmem:[#allocation7 + $0x148] sm:$0xff]
    %v424 = vld [vmem:[#allocation7 + $0x150] sm:$0xff]
    %v425 = vld [vmem:[#allocation7 + $0x158] sm:$0xff]
    %v426 = vld [vmem:[#allocation7 + $0x160] sm:$0xff]
    %v427 = vld [vmem:[#allocation7 + $0x168] sm:$0xff]
    %v428 = vld [vmem:[#allocation7 + $0x170] sm:$0xff]
    %v429 = vld [vmem:[#allocation7 + $0x178] sm:$0xff]
    %v430 = vld [vmem:[#allocation7 + $0x180] sm:$0xff]
    %v431 = vld [vmem:[#allocation7 + $0x188] sm:$0xff]
    %v432 = vld [vmem:[#allocation7 + $0x190] sm:$0xff]
    %v433 = vld [vmem:[#allocation7 + $0x198] sm:$0xff]
    %v434 = vld [vmem:[#allocation7 + $0x1a0] sm:$0xff]
    %v435 = vld [vmem:[#allocation7 + $0x1a8] sm:$0xff]
    %v436 = vld [vmem:[#allocation7 + $0x1b0] sm:$0xff]
    %v437 = vld [vmem:[#allocation7 + $0x1b8] sm:$0xff]
    %v438 = vld [vmem:[#allocation7 + $0x1c0] sm:$0xff]
    %v439 = vld [vmem:[#allocation7 + $0x1c8] sm:$0xff]
    %v440 = vld [vmem:[#allocation7 + $0x1d0] sm:$0xff]
    %v441 = vld [vmem:[#allocation7 + $0x1d8] sm:$0xff]
    %v442 = vld [vmem:[#allocation7 + $0x1e0] sm:$0xff]
    %v443 = vld [vmem:[#allocation7 + $0x1e8] sm:$0xff]
    %v444 = vld [vmem:[#allocation7 + $0x1f0] sm:$0xff]
    %v445 = vld [vmem:[#allocation7 + $0x1f8] sm:$0xff]
    %v446 = vld [vmem:[#allocation7 + $0x200] sm:$0xff]
    %v447 = vld [vmem:[#allocation7 + $0x208] sm:$0xff]
    %v448 = vld [vmem:[#allocation7 + $0x210] sm:$0xff]
    %v449 = vld [vmem:[#allocation7 + $0x218] sm:$0xff]
    %v450 = vld [vmem:[#allocation7 + $0x220] sm:$0xff]
    %v451 = vld [vmem:[#allocation7 + $0x228] sm:$0xff]
    %v452 = vld [vmem:[#allocation7 + $0x230] sm:$0xff]
    %v453 = vld [vmem:[#allocation7 + $0x238] sm:$0xff]
    %v454 = vld [vmem:[#allocation7 + $0x240] sm:$0xff]
    %v455 = vld [vmem:[#allocation7 + $0x248] sm:$0xff]
    %v456 = vld [vmem:[#allocation7 + $0x250] sm:$0xff]
    %v457 = vld [vmem:[#allocation7 + $0x258] sm:$0xff]
    %v458 = vld [vmem:[#allocation7 + $0x260] sm:$0xff]
    %v459 = vld [vmem:[#allocation7 + $0x268] sm:$0xff]
    %v460 = vld [vmem:[#allocation7 + $0x270] sm:$0xff]
    %v461 = vld [vmem:[#allocation7 + $0x278] sm:$0xff]
    %v462 = vld [vmem:[#allocation7 + $0x280] sm:$0xff]
    %v463 = vld [vmem:[#allocation7 + $0x288] sm:$0xff]
    %v464 = vld [vmem:[#allocation7 + $0x290] sm:$0xff]
    %v465 = vld [vmem:[#allocation7 + $0x298] sm:$0xff]
    %v466 = vld [vmem:[#allocation7 + $0x2a0] sm:$0xff]
    %v467 = vld [vmem:[#allocation7 + $0x2a8] sm:$0xff]
    %v468 = vld [vmem:[#allocation7 + $0x2b0] sm:$0xff]
    %v469 = vld [vmem:[#allocation7 + $0x2b8] sm:$0xff]
    %v470 = vld [vmem:[#allocation7 + $0x2c0] sm:$0xff]
    %v471 = vld [vmem:[#allocation7 + $0x2c8] sm:$0xff]
    %v472 = vld [vmem:[#allocation7 + $0x2d0] sm:$0xff]
    %v473 = vld [vmem:[#allocation7 + $0x2d8] sm:$0xff]
    %v474 = vld [vmem:[#allocation7 + $0x2e0] sm:$0xff]
    %v475 = vld [vmem:[#allocation7 + $0x2e8] sm:$0xff]
    %v476 = vld [vmem:[#allocation7 + $0x2f0] sm:$0xff]
    %v477 = vld [vmem:[#allocation7 + $0x2f8] sm:$0xff]
    %v478 = vld [vmem:[#allocation7 + $0x300] sm:$0xff]
    %v479 = vld [vmem:[#allocation7 + $0x308] sm:$0xff]
    %v480 = vld [vmem:[#allocation7 + $0x310] sm:$0xff]
    %v481 = vld [vmem:[#allocation7 + $0x318] sm:$0xff]
    %v482 = vld [vmem:[#allocation7 + $0x320] sm:$0xff]
    %v483 = vld [vmem:[#allocation7 + $0x328] sm:$0xff]
    %v484 = vld [vmem:[#allocation7 + $0x330] sm:$0xff]
    %v485 = vld [vmem:[#allocation7 + $0x338] sm:$0xff]
    %v486 = vld [vmem:[#allocation7 + $0x340] sm:$0xff]
    %v487 = vld [vmem:[#allocation7 + $0x348] sm:$0xff]
    %v488 = vld [vmem:[#allocation7 + $0x350] sm:$0xff]
    %v489 = vld [vmem:[#allocation7 + $0x358] sm:$0xff]
    %v490 = vld [vmem:[#allocation7 + $0x360] sm:$0xff]
    %v491 = vld [vmem:[#allocation7 + $0x368] sm:$0xff]
    %v492 = vld [vmem:[#allocation7 + $0x370] sm:$0xff]
    %v493 = vld [vmem:[#allocation7 + $0x378] sm:$0xff]
    %v494 = vld [vmem:[#allocation7 + $0x380] sm:$0xff]
    %v495 = vld [vmem:[#allocation7 + $0x388] sm:$0xff]
    %v496 = vld [vmem:[#allocation7 + $0x390] sm:$0xff]
    %v497 = vld [vmem:[#allocation7 + $0x398] sm:$0xff]
    %v498 = vld [vmem:[#allocation7 + $0x3a0] sm:$0xff]
    %v499 = vld [vmem:[#allocation7 + $0x3a8] sm:$0xff]
    %v500 = vld [vmem:[#allocation7 + $0x3b0] sm:$0xff]
    %v501 = vld [vmem:[#allocation7 + $0x3b8] sm:$0xff]
    %v502 = vld [vmem:[#allocation7 + $0x3c0] sm:$0xff]
    %v503 = vld [vmem:[#allocation7 + $0x3c8] sm:$0xff]
    %v504 = vld [vmem:[#allocation7 + $0x3d0] sm:$0xff]
    %v505 = vld [vmem:[#allocation7 + $0x3d8] sm:$0xff]
    %v506 = vld [vmem:[#allocation7 + $0x3e0] sm:$0xff]
    %v507 = vld [vmem:[#allocation7 + $0x3e8] sm:$0xff]
    %v508 = vld [vmem:[#allocation7 + $0x3f0] sm:$0xff]
    %v509 = vld [vmem:[#allocation7 + $0x3f8] sm:$0xff]
    %v510 = vld [vmem:[%s4] sm:$0x3]
    %v512 = vlaneseq
    %v513 = vshrl.u32 %v512, 7
    %v514 = vsub.s32 0, %v513
    %v515 = vrot.slane %v510, %v514
    %v516 = vlaneseq
    %v517 = vshrl.u32 %v516, 7
    %v518 = vsub.s32 1, %v517
    %v519 = vrot.slane %v510, %v518
    %522 = vmatprep.subr.mxu0 %v413
    %523 = vmatpush1.msra.mxu0 %v412
    %524 = vmatprep.subr.mxu0 %v411
    %525 = vmatpush1.msra.mxu0 %v410
    %526 = vmatprep.subr.mxu0 %v409
    %527 = vmatpush1.msra.mxu0 %v408
    %528 = vmatprep.subr.mxu0 %v407
    %529 = vmatpush1.msra.mxu0 %v406
    %530 = vmatprep.subr.mxu0 %v405
    %531 = vmatpush1.msra.mxu0 %v404
    %532 = vmatprep.subr.mxu0 %v403
    %533 = vmatpush1.msra.mxu0 %v402
    %534 = vmatprep.subr.mxu0 %v401
    %535 = vmatpush1.msra.mxu0 %v400
    %536 = vmatprep.subr.mxu0 %v399
    %537 = vmatpush1.msra.mxu0 %v398
    %538 = vmatprep.subr.mxu0 %v397
    %539 = vmatpush1.msra.mxu0 %v396
    %540 = vmatprep.subr.mxu0 %v395
    %541 = vmatpush1.msra.mxu0 %v394
    %542 = vmatprep.subr.mxu0 %v393
    %543 = vmatpush1.msra.mxu0 %v392
    %544 = vmatprep.subr.mxu0 %v391
    %545 = vmatpush1.msra.mxu0 %v390
    %546 = vmatprep.subr.mxu0 %v389
    %547 = vmatpush1.msra.mxu0 %v388
    %548 = vmatprep.subr.mxu0 %v387
    %549 = vmatpush1.msra.mxu0 %v386
    %550 = vmatprep.subr.mxu0 %v385
    %551 = vmatpush1.msra.mxu0 %v384
    %552 = vmatprep.subr.mxu0 %v383
    %553 = vmatpush1.msra.mxu0 %v382
    %554 = vmatprep.subr.mxu0 %v445
    %555 = vmatpush2.msra.mxu0 %v444
    %556 = vmatprep.subr.mxu0 %v443
    %557 = vmatpush2.msra.mxu0 %v442
    %558 = vmatprep.subr.mxu0 %v441
    %559 = vmatpush2.msra.mxu0 %v440
    %560 = vmatprep.subr.mxu0 %v439
    %561 = vmatpush2.msra.mxu0 %v438
    %562 = vmatprep.subr.mxu0 %v437
    %563 = vmatpush2.msra.mxu0 %v436
    %564 = vmatprep.subr.mxu0 %v435
    %565 = vmatpush2.msra.mxu0 %v434
    %566 = vmatprep.subr.mxu0 %v433
    %567 = vmatpush2.msra.mxu0 %v432
    %568 = vmatprep.subr.mxu0 %v431
    %569 = vmatpush2.msra.mxu0 %v430
    %570 = vmatprep.subr.mxu0 %v429
    %571 = vmatpush2.msra.mxu0 %v428
    %572 = vmatprep.subr.mxu0 %v427
    %573 = vmatpush2.msra.mxu0 %v426
    %574 = vmatprep.subr.mxu0 %v425
    %575 = vmatpush2.msra.mxu0 %v424
    %576 = vmatprep.subr.mxu0 %v423
    %577 = vmatpush2.msra.mxu0 %v422
    %578 = vmatprep.subr.mxu0 %v421
    %579 = vmatpush2.msra.mxu0 %v420
    %580 = vmatprep.subr.mxu0 %v419
    %581 = vmatpush2.msra.mxu0 %v418
    %582 = vmatprep.subr.mxu0 %v417
    %583 = vmatpush2.msra.mxu0 %v416
    %584 = vmatprep.subr.mxu0 %v415
    %585 = vmatpush2.msra.mxu0 %v414
    %586 = vmatprep.mubr.f32.mxu0 %v379
    %587 = vmatmul.mubr.f32.gmra.mxu0 %v378
    %v588 = vpop.f32.mrf.mxu0
    %v589 = vadd.f32 %v515, %v588
    %v590 = vpop.f32.mrf.mxu0
    %v591 = vadd.f32 %v519, %v590
    %592 = vdwg.mxu0
    %593 = vmatprep.subr.mxu0 %v477
    %594 = vmatpush1.msra.mxu0 %v476
    %595 = vmatprep.subr.mxu0 %v475
    %596 = vmatpush1.msra.mxu0 %v474
    %597 = vmatprep.subr.mxu0 %v473
    %598 = vmatpush1.msra.mxu0 %v472
    %599 = vmatprep.subr.mxu0 %v471
    %600 = vmatpush1.msra.mxu0 %v470
    %601 = vmatprep.subr.mxu0 %v469
    %602 = vmatpush1.msra.mxu0 %v468
    %603 = vmatprep.subr.mxu0 %v467
    %604 = vmatpush1.msra.mxu0 %v466
    %605 = vmatprep.subr.mxu0 %v465
    %606 = vmatpush1.msra.mxu0 %v464
    %607 = vmatprep.subr.mxu0 %v463
    %608 = vmatpush1.msra.mxu0 %v462
    %609 = vmatprep.subr.mxu0 %v461
    %610 = vmatpush1.msra.mxu0 %v460
    %611 = vmatprep.subr.mxu0 %v459
    %612 = vmatpush1.msra.mxu0 %v458
    %613 = vmatprep.subr.mxu0 %v457
    %614 = vmatpush1.msra.mxu0 %v456
    %615 = vmatprep.subr.mxu0 %v455
    %616 = vmatpush1.msra.mxu0 %v454
    %617 = vmatprep.subr.mxu0 %v453
    %618 = vmatpush1.msra.mxu0 %v452
    %619 = vmatprep.subr.mxu0 %v451
    %620 = vmatpush1.msra.mxu0 %v450
    %621 = vmatprep.subr.mxu0 %v449
    %622 = vmatpush1.msra.mxu0 %v448
    %623 = vmatprep.subr.mxu0 %v447
    %624 = vmatpush1.msra.mxu0 %v446
    %625 = vmatprep.subr.mxu0 %v509
    %626 = vmatpush2.msra.mxu0 %v508
    %627 = vmatprep.subr.mxu0 %v507
    %628 = vmatpush2.msra.mxu0 %v506
    %629 = vmatprep.subr.mxu0 %v505
    %630 = vmatpush2.msra.mxu0 %v504
    %631 = vmatprep.subr.mxu0 %v503
    %632 = vmatpush2.msra.mxu0 %v502
    %633 = vmatprep.subr.mxu0 %v501
    %634 = vmatpush2.msra.mxu0 %v500
    %635 = vmatprep.subr.mxu0 %v499
    %636 = vmatpush2.msra.mxu0 %v498
    %637 = vmatprep.subr.mxu0 %v497
    %638 = vmatpush2.msra.mxu0 %v496
    %639 = vmatprep.subr.mxu0 %v495
    %640 = vmatpush2.msra.mxu0 %v494
    %641 = vmatprep.subr.mxu0 %v493
    %642 = vmatpush2.msra.mxu0 %v492
    %643 = vmatprep.subr.mxu0 %v491
    %644 = vmatpush2.msra.mxu0 %v490
    %645 = vmatprep.subr.mxu0 %v489
    %646 = vmatpush2.msra.mxu0 %v488
    %647 = vmatprep.subr.mxu0 %v487
    %648 = vmatpush2.msra.mxu0 %v486
    %649 = vmatprep.subr.mxu0 %v485
    %650 = vmatpush2.msra.mxu0 %v484
    %651 = vmatprep.subr.mxu0 %v483
    %652 = vmatpush2.msra.mxu0 %v482
    %653 = vmatprep.subr.mxu0 %v481
    %654 = vmatpush2.msra.mxu0 %v480
    %655 = vmatprep.subr.mxu0 %v479
    %656 = vmatpush2.msra.mxu0 %v478
    %657 = vmatprep.mubr.f32.mxu0 %v381
    %658 = vmatmul.mubr.f32.gmra.mxu0 %v380
    %v659 = vpop.f32.mrf.mxu0
    %v660 = vadd.f32 %v589, %v659
    %v661 = vpop.f32.mrf.mxu0
    %v662 = vadd.f32 %v591, %v661
    %663 = vdwg.mxu0
    %vm664 = vcmp.ge.f32.partialorder %v660, 0.0
    %vm665 = vcmp.ge.f32.partialorder %v662, 0.0
    %v666 = vmul.f32 %v660, 0.2
    %v667 = vmul.f32 %v662, 0.2
    %v668 = vsel %vm664, %v660, %v666
    %v669 = vsel %vm665, %v662, %v667
    %670 = vst [vmem:[#allocation3] sm:$0xff] %v668
    %671 = vst [vmem:[#allocation3 + $0x8] sm:$0xff] %v669
    %v672 = vld [vmem:[#allocation3] sm:$0xff]
    %v673 = vld [vmem:[#allocation3 + $0x8] sm:$0xff]
    %v674 = vld [vmem:[#allocation9] sm:$0xff]
    %v675 = vld [vmem:[#allocation9 + $0x8] sm:$0xff]
    %v676 = vld [vmem:[#allocation9 + $0x10] sm:$0xff]
    %v677 = vld [vmem:[#allocation9 + $0x18] sm:$0xff]
    %v678 = vld [vmem:[#allocation9 + $0x20] sm:$0xff]
    %v679 = vld [vmem:[#allocation9 + $0x28] sm:$0xff]
    %v680 = vld [vmem:[#allocation9 + $0x30] sm:$0xff]
    %v681 = vld [vmem:[#allocation9 + $0x38] sm:$0xff]
    %v682 = vld [vmem:[#allocation9 + $0x40] sm:$0xff]
    %v683 = vld [vmem:[#allocation9 + $0x48] sm:$0xff]
    %v684 = vld [vmem:[#allocation9 + $0x50] sm:$0xff]
    %v685 = vld [vmem:[#allocation9 + $0x58] sm:$0xff]
    %v686 = vld [vmem:[#allocation9 + $0x60] sm:$0xff]
    %v687 = vld [vmem:[#allocation9 + $0x68] sm:$0xff]
    %v688 = vld [vmem:[#allocation9 + $0x70] sm:$0xff]
    %v689 = vld [vmem:[#allocation9 + $0x78] sm:$0xff]
    %v690 = vld [vmem:[#allocation9 + $0x80] sm:$0xff]
    %v691 = vld [vmem:[#allocation9 + $0x88] sm:$0xff]
    %v692 = vld [vmem:[#allocation9 + $0x90] sm:$0xff]
    %v693 = vld [vmem:[#allocation9 + $0x98] sm:$0xff]
    %v694 = vld [vmem:[#allocation9 + $0xa0] sm:$0xff]
    %v695 = vld [vmem:[#allocation9 + $0xa8] sm:$0xff]
    %v696 = vld [vmem:[#allocation9 + $0xb0] sm:$0xff]
    %v697 = vld [vmem:[#allocation9 + $0xb8] sm:$0xff]
    %v698 = vld [vmem:[#allocation9 + $0xc0] sm:$0xff]
    %v699 = vld [vmem:[#allocation9 + $0xc8] sm:$0xff]
    %v700 = vld [vmem:[#allocation9 + $0xd0] sm:$0xff]
    %v701 = vld [vmem:[#allocation9 + $0xd8] sm:$0xff]
    %v702 = vld [vmem:[#allocation9 + $0xe0] sm:$0xff]
    %v703 = vld [vmem:[#allocation9 + $0xe8] sm:$0xff]
    %v704 = vld [vmem:[#allocation9 + $0xf0] sm:$0xff]
    %v705 = vld [vmem:[#allocation9 + $0xf8] sm:$0xff]
    %v706 = vld [vmem:[%s6] sm:$0x1]
    %v708 = vlaneseq
    %v709 = vshrl.u32 %v708, 7
    %v710 = vsub.s32 0, %v709
    %v711 = vrot.slane %v706, %v710
    %713 = vmatprep.subr.mxu0 0.0
    %714 = vmatpush1.msra.mxu0 %v689
    %715 = vmatprep.subr.mxu0 0.0
    %716 = vmatpush1.msra.mxu0 %v688
    %717 = vmatprep.subr.mxu0 0.0
    %718 = vmatpush1.msra.mxu0 %v687
    %719 = vmatprep.subr.mxu0 0.0
    %720 = vmatpush1.msra.mxu0 %v686
    %721 = vmatprep.subr.mxu0 0.0
    %722 = vmatpush1.msra.mxu0 %v685
    %723 = vmatprep.subr.mxu0 0.0
    %724 = vmatpush1.msra.mxu0 %v684
    %725 = vmatprep.subr.mxu0 0.0
    %726 = vmatpush1.msra.mxu0 %v683
    %727 = vmatprep.subr.mxu0 0.0
    %728 = vmatpush1.msra.mxu0 %v682
    %729 = vmatprep.subr.mxu0 0.0
    %730 = vmatpush1.msra.mxu0 %v681
    %731 = vmatprep.subr.mxu0 0.0
    %732 = vmatpush1.msra.mxu0 %v680
    %733 = vmatprep.subr.mxu0 0.0
    %734 = vmatpush1.msra.mxu0 %v679
    %735 = vmatprep.subr.mxu0 0.0
    %736 = vmatpush1.msra.mxu0 %v678
    %737 = vmatprep.subr.mxu0 0.0
    %738 = vmatpush1.msra.mxu0 %v677
    %739 = vmatprep.subr.mxu0 0.0
    %740 = vmatpush1.msra.mxu0 %v676
    %741 = vmatprep.subr.mxu0 0.0
    %742 = vmatpush1.msra.mxu0 %v675
    %743 = vmatprep.subr.mxu0 0.0
    %744 = vmatpush1.msra.mxu0 %v674
    %745 = vmatprep.subr.mxu0 0.0
    %746 = vmatpush2.msra.mxu0 %v705
    %747 = vmatprep.subr.mxu0 0.0
    %748 = vmatpush2.msra.mxu0 %v704
    %749 = vmatprep.subr.mxu0 0.0
    %750 = vmatpush2.msra.mxu0 %v703
    %751 = vmatprep.subr.mxu0 0.0
    %752 = vmatpush2.msra.mxu0 %v702
    %753 = vmatprep.subr.mxu0 0.0
    %754 = vmatpush2.msra.mxu0 %v701
    %755 = vmatprep.subr.mxu0 0.0
    %756 = vmatpush2.msra.mxu0 %v700
    %757 = vmatprep.subr.mxu0 0.0
    %758 = vmatpush2.msra.mxu0 %v699
    %759 = vmatprep.subr.mxu0 0.0
    %760 = vmatpush2.msra.mxu0 %v698
    %761 = vmatprep.subr.mxu0 0.0
    %762 = vmatpush2.msra.mxu0 %v697
    %763 = vmatprep.subr.mxu0 0.0
    %764 = vmatpush2.msra.mxu0 %v696
    %765 = vmatprep.subr.mxu0 0.0
    %766 = vmatpush2.msra.mxu0 %v695
    %767 = vmatprep.subr.mxu0 0.0
    %768 = vmatpush2.msra.mxu0 %v694
    %769 = vmatprep.subr.mxu0 0.0
    %770 = vmatpush2.msra.mxu0 %v693
    %771 = vmatprep.subr.mxu0 0.0
    %772 = vmatpush2.msra.mxu0 %v692
    %773 = vmatprep.subr.mxu0 0.0
    %774 = vmatpush2.msra.mxu0 %v691
    %775 = vmatprep.subr.mxu0 0.0
    %776 = vmatpush2.msra.mxu0 %v690
    %777 = vmatprep.mubr.f32.mxu0 %v673
    %778 = vmatmul.mubr.f32.gmra.mxu0 %v672
    %v779 = vpop.f32.mrf.mxu0
    %v780 = vadd.f32 %v711, %v779
    %v781 = vpop.f32.mrf.mxu0
    %782 = vdwg.mxu0
    %783 = vst [vmem:[#allocation10] sm:$0xff] %v780
    // Predicated region
    $region42: #{encoder_forward.1} parent=1 // pred_check
      _
    $region43: #{encoder_forward.1} parent=1 // pred_check_branch
      %785 = sbr.rel (0) target = $region45
    $region44: #{encoder_forward.1} parent=1 // pred_region
      %s787 = ssub.s32 128, 128
      %788 = vsyncadd [#allocation6], %s787
      %s790 = sshll.u32 [#allocation10], 4
      %s791 = int_to_ptr.vmem [resolvable:$true] %s790
      %793 = dma.vmem_to_hbm [thread:$0]  %s791, 128, %s7, [#allocation6]
    $region45: #{encoder_forward.1} parent=1 // pred_fallthru
      _
    // Predicated region
    $region46: #{encoder_forward.1} parent=1 // pred_check
      _
    $region47: #{encoder_forward.1} parent=1 // pred_check_branch
      %795 = sbr.rel (0) target = $region49
    $region48: #{encoder_forward.1} parent=1 // pred_region
      %796 = dma.done [#allocation6], 128
    $region49: #{encoder_forward.1} parent=1 // pred_fallthru
      _
    %797 = vsyncpa [#allocation5], 1
    %798 = vsyncpa [#allocation8], 1
    %799 = vsyncpa [#allocation6], 1

</llo_original>
